<compile_context>
chip_gen: v7x
topology: tpu7x:2x2x1
jax: 0.10.0
libtpu: 0.0.40
codegen_flags: <defaults>
</compile_context>

<pallas_src>
import functools
import math

import jax
import jax.numpy as jnp
from jax import lax
from jax.experimental import pallas as pl
from jax.experimental.pallas import tpu as pltpu


_INV_SQRT2 = 1.0 / math.sqrt(2.0)


def _gelu(x, approximate):
    if approximate:
        # tanh-approx GELU: exp/tanh go to the EUP slot (free filler here).
        return jax.nn.gelu(x, approximate=True)
    # PyTorch F.gelu default (exact): 0.5 * x * (1 + erf(x / sqrt(2)))
    return 0.5 * x * (1.0 + lax.erf(x * _INV_SQRT2))


def _mlp_decoder_kernel(x_ref, w1_ref, b1_ref, w2_ref, b2_ref, w3_ref, b3_ref,
                        o_ref, *, compute_dtype, approximate_gelu):
    x = x_ref[...].astype(compute_dtype)

    h = jnp.dot(x, w1_ref[...], preferred_element_type=jnp.float32)
    h = _gelu(h + b1_ref[...].astype(jnp.float32), approximate_gelu)

    h = jnp.dot(h.astype(compute_dtype), w2_ref[...],
                preferred_element_type=jnp.float32)
    h = _gelu(h + b2_ref[...].astype(jnp.float32), approximate_gelu)

    h = jnp.dot(h.astype(compute_dtype), w3_ref[...],
                preferred_element_type=jnp.float32)
    o_ref[...] = (h + b3_ref[...].astype(jnp.float32)).astype(o_ref.dtype)


def _choose_tile_b(batch, tile_b):
    """Largest sublane-aligned batch tile <= tile_b, keeping >= 2 grid steps
    when the batch allows so both v7x TensorCores get work."""
    tb = min(tile_b, batch)
    if batch > 8 and tb * 2 > batch:      # would collapse to grid == 1
        tb = pl.cdiv(batch, 2)
    tb = max(8, ((tb + 7) // 8) * 8)      # multiple of 8 (sublanes)
    return tb


def mlp_decoder(x, params, *, tile_b=512, compute_dtype=jnp.float32,
                approximate_gelu=False):
    """Fused MLPDecoder forward.

    x: [B, latent_dim] float32.
    params: dict with weights pre-transposed to [in, out], biases [1, out].
    tile_b: max batch rows per grid step (main tuning knob; ~1.3 MiB VMEM per
        step even at tile_b=1024 for these dims).
    compute_dtype: dtype fed to the MXU (jnp.bfloat16 recommended on v6e/v7x).
    approximate_gelu: tanh-approx GELU (EUP) instead of exact erf (VPU).
    """
    w1, b1 = params["w1"], params["b1"]   # [latent, h2], [1, h2]
    w2, b2 = params["w2"], params["b2"]   # [h2, h1],    [1, h1]
    w3, b3 = params["w3"], params["b3"]   # [h1, out],   [1, out]

    B, latent_dim = x.shape
    h2_dim = w1.shape[1]
    h1_dim = w2.shape[1]
    out_dim = w3.shape[1]

    tb = _choose_tile_b(B, tile_b)
    grid_len = pl.cdiv(B, tb)
    b_pad = grid_len * tb
    if b_pad != B:
        # Pad the batch so the perf-optimal tile works for any B; padded rows
        # are sliced off below.
        x = jnp.pad(x, ((0, b_pad - B), (0, 0)))

    # Cast weights once in the wrapper (not per grid step).
    w1c = w1.astype(compute_dtype)
    w2c = w2.astype(compute_dtype)
    w3c = w3.astype(compute_dtype)

    w_item = jnp.dtype(compute_dtype).itemsize
    weight_bytes = (w1.size + w2.size + w3.size) * w_item \
                   + (b1.size + b2.size + b3.size) * 4
    cost = pl.CostEstimate(
        flops=2 * b_pad * (latent_dim * h2_dim + h2_dim * h1_dim
                           + h1_dim * out_dim),
        transcendentals=b_pad * (h2_dim + h1_dim),
        bytes_accessed=4 * b_pad * (latent_dim + out_dim) + weight_bytes,
    )

    kernel = functools.partial(_mlp_decoder_kernel,
                               compute_dtype=compute_dtype,
                               approximate_gelu=approximate_gelu)

    # Constant index_map -> grid-invariant weight/bias blocks (DMA'd once).
    full = lambda shape: pl.BlockSpec(shape, lambda i: (0, 0))

    out = pl.pallas_call(
        kernel,
        out_shape=jax.ShapeDtypeStruct((b_pad, out_dim), x.dtype),
        grid_spec=pltpu.PrefetchScalarGridSpec(
            num_scalar_prefetch=0,
            grid=(grid_len,),
            in_specs=[
                pl.BlockSpec((tb, latent_dim), lambda i: (i, 0)),  # x tile
                full((latent_dim, h2_dim)),                         # w1
                full((1, h2_dim)),                                  # b1
                full((h2_dim, h1_dim)),                             # w2
                full((1, h1_dim)),                                  # b2
                full((h1_dim, out_dim)),                            # w3
                full((1, out_dim)),                                 # b3
            ],
            out_specs=pl.BlockSpec((tb, out_dim), lambda i: (i, 0)),
        ),
        compiler_params=pltpu.CompilerParams(
            dimension_semantics=("parallel",)),
        cost_estimate=cost,
    )(x, w1c, b1, w2c, b2, w3c, b3)

    return out[:B] if b_pad != B else out


def init_params(key, latent_dim, hidden_dim2, hidden_dim1, input_dim):
    """nn.Linear-style init (uniform(-1/sqrt(fan_in), 1/sqrt(fan_in))),
    weights stored pre-transposed to [in, out]."""
    ks = jax.random.split(key, 6)

    def linear(kw, kb, fan_in, fan_out):
        bound = 1.0 / math.sqrt(fan_in)
        w = jax.random.uniform(kw, (fan_in, fan_out), jnp.float32, -bound, bound)
        b = jax.random.uniform(kb, (1, fan_out), jnp.float32, -bound, bound)
        return w, b

    w1, b1 = linear(ks[0], ks[1], latent_dim, hidden_dim2)
    w2, b2 = linear(ks[2], ks[3], hidden_dim2, hidden_dim1)
    w3, b3 = linear(ks[4], ks[5], hidden_dim1, input_dim)
    return {"w1": w1, "b1": b1, "w2": w2, "b2": b2, "w3": w3, "b3": b3}


def reference_forward(x, p):
    h = _gelu(x @ p["w1"] + p["b1"], False)
    h = _gelu(h @ p["w2"] + p["b2"], False)
    return h @ p["w3"] + p["b3"]


if __name__ == "__main__":
    latent_dim, hidden_dim2, hidden_dim1, input_dim = 32, 64, 128, 256

    key = jax.random.PRNGKey(0)
    kx, kp, kx2 = jax.random.split(key, 3)
    params = init_params(kp, latent_dim, hidden_dim2, hidden_dim1, input_dim)

    # 1) Exact path (f32 MXU inputs, erf GELU) -- bit-faithful to PyTorch
    #    F.gelu default; batch splits into 2 grid steps (megacore-friendly).
    batch = 64
    x = jax.random.normal(kx, (batch, latent_dim), jnp.float32)
    out = jax.block_until_ready(mlp_decoder(x, params))
    ref = reference_forward(x, params)
    assert out.shape == (batch, input_dim)
    assert jnp.allclose(out, ref, atol=1e-5, rtol=1e-5)

    # 2) Fast path: ragged batch (exercises cdiv + padding), bf16 MXU inputs,
    #    tanh-approx GELU.  Compared at loose tolerance vs the f32/erf ref.
    batch2 = 50
    x2 = jax.random.normal(kx2, (batch2, latent_dim), jnp.float32)
    out2 = jax.block_until_ready(
        mlp_decoder(x2, params, tile_b=1024, compute_dtype=jnp.bfloat16,
                    approximate_gelu=True))
    ref2 = reference_forward(x2, params)
    assert out2.shape == (batch2, input_dim)
    rel_err = jnp.linalg.norm(out2 - ref2) / jnp.linalg.norm(ref2)
    assert rel_err < 5e-2, rel_err

    print("KERNEL_OK")
</pallas_src>

<mosaic_0001>
module attributes {stable_mosaic.version = 11 : i64} {
  func.func @_mlp_decoder_kernel(%arg0: i32, %arg1: memref<32x32xf32, #tpu.memory_space<vmem>>, %arg2: memref<32x64xf32, #tpu.memory_space<vmem>>, %arg3: memref<1x64xf32, #tpu.memory_space<vmem>>, %arg4: memref<64x128xf32, #tpu.memory_space<vmem>>, %arg5: memref<1x128xf32, #tpu.memory_space<vmem>>, %arg6: memref<128x256xf32, #tpu.memory_space<vmem>>, %arg7: memref<1x256xf32, #tpu.memory_space<vmem>>, %arg8: memref<32x256xf32, #tpu.memory_space<vmem>>) attributes {dimension_semantics = [#tpu.dimension_semantics<parallel>], iteration_bounds = array<i64: 2>, scalar_prefetch = 0 : i64, scratch_operands = 0 : i64, tpu.core_type = #tpu.core_type<tc>, window_params = [{transform_indices = @transform_0, window_bounds = array<i64: 32, 32>}, {pipeline_mode = #tpu.pipeline_mode<synchronous>, transform_indices = @transform_1, window_bounds = array<i64: 32, 64>}, {pipeline_mode = #tpu.pipeline_mode<synchronous>, transform_indices = @transform_2, window_bounds = array<i64: 1, 64>}, {pipeline_mode = #tpu.pipeline_mode<synchronous>, transform_indices = @transform_3, window_bounds = array<i64: 64, 128>}, {pipeline_mode = #tpu.pipeline_mode<synchronous>, transform_indices = @transform_4, window_bounds = array<i64: 1, 128>}, {pipeline_mode = #tpu.pipeline_mode<synchronous>, transform_indices = @transform_5, window_bounds = array<i64: 128, 256>}, {pipeline_mode = #tpu.pipeline_mode<synchronous>, transform_indices = @transform_6, window_bounds = array<i64: 1, 256>}, {transform_indices = @transform_7, window_bounds = array<i64: 32, 256>}]} {
    %c0 = arith.constant 0 : index
    %c0_0 = arith.constant 0 : index
    %0 = vector.load %arg1[%c0, %c0_0] : memref<32x32xf32, #tpu.memory_space<vmem>>, vector<32x32xf32>
    %c0_1 = arith.constant 0 : index
    %c0_2 = arith.constant 0 : index
    %1 = vector.load %arg2[%c0_1, %c0_2] : memref<32x64xf32, #tpu.memory_space<vmem>>, vector<32x64xf32>
    %cst = arith.constant dense<0.000000e+00> : vector<32x64xf32>
    %2 = tpu.matmul %0, %1, %cst {dimension_numbers = #tpu.dot_dimension_numbers<[1], [0], [0], [1], [0, 0, 1, 1], [], []>} : vector<32x32xf32>, vector<32x64xf32>, vector<32x64xf32> -> vector<32x64xf32>
    %c0_3 = arith.constant 0 : index
    %c0_4 = arith.constant 0 : index
    %3 = vector.load %arg3[%c0_3, %c0_4] : memref<1x64xf32, #tpu.memory_space<vmem>>, vector<1x64xf32>
    %4 = vector.broadcast %3 : vector<1x64xf32> to vector<32x64xf32>
    %5 = arith.addf %2, %4 : vector<32x64xf32>
    %cst_5 = arith.constant 5.000000e-01 : f32
    %6 = vector.broadcast %cst_5 : f32 to vector<32x64xf32>
    %7 = arith.mulf %6, %5 : vector<32x64xf32>
    %cst_6 = arith.constant 0.707106769 : f32
    %8 = vector.broadcast %cst_6 : f32 to vector<32x64xf32>
    %9 = arith.mulf %5, %8 : vector<32x64xf32>
    %10 = math.erf %9 : vector<32x64xf32>
    %cst_7 = arith.constant 1.000000e+00 : f32
    %11 = vector.broadcast %cst_7 : f32 to vector<32x64xf32>
    %12 = arith.addf %11, %10 : vector<32x64xf32>
    %13 = arith.mulf %7, %12 : vector<32x64xf32>
    %c0_8 = arith.constant 0 : index
    %c0_9 = arith.constant 0 : index
    %14 = vector.load %arg4[%c0_8, %c0_9] : memref<64x128xf32, #tpu.memory_space<vmem>>, vector<64x128xf32>
    %cst_10 = arith.constant dense<0.000000e+00> : vector<32x128xf32>
    %15 = tpu.matmul %13, %14, %cst_10 {dimension_numbers = #tpu.dot_dimension_numbers<[1], [0], [0], [1], [0, 0, 1, 1], [], []>} : vector<32x64xf32>, vector<64x128xf32>, vector<32x128xf32> -> vector<32x128xf32>
    %c0_11 = arith.constant 0 : index
    %c0_12 = arith.constant 0 : index
    %16 = vector.load %arg5[%c0_11, %c0_12] : memref<1x128xf32, #tpu.memory_space<vmem>>, vector<1x128xf32>
    %17 = vector.broadcast %16 : vector<1x128xf32> to vector<32x128xf32>
    %18 = arith.addf %15, %17 : vector<32x128xf32>
    %cst_13 = arith.constant 5.000000e-01 : f32
    %19 = vector.broadcast %cst_13 : f32 to vector<32x128xf32>
    %20 = arith.mulf %19, %18 : vector<32x128xf32>
    %cst_14 = arith.constant 0.707106769 : f32
    %21 = vector.broadcast %cst_14 : f32 to vector<32x128xf32>
    %22 = arith.mulf %18, %21 : vector<32x128xf32>
    %23 = math.erf %22 : vector<32x128xf32>
    %cst_15 = arith.constant 1.000000e+00 : f32
    %24 = vector.broadcast %cst_15 : f32 to vector<32x128xf32>
    %25 = arith.addf %24, %23 : vector<32x128xf32>
    %26 = arith.mulf %20, %25 : vector<32x128xf32>
    %c0_16 = arith.constant 0 : index
    %c0_17 = arith.constant 0 : index
    %27 = vector.load %arg6[%c0_16, %c0_17] : memref<128x256xf32, #tpu.memory_space<vmem>>, vector<128x256xf32>
    %cst_18 = arith.constant dense<0.000000e+00> : vector<32x256xf32>
    %28 = tpu.matmul %26, %27, %cst_18 {dimension_numbers = #tpu.dot_dimension_numbers<[1], [0], [0], [1], [0, 0, 1, 1], [], []>} : vector<32x128xf32>, vector<128x256xf32>, vector<32x256xf32> -> vector<32x256xf32>
    %c0_19 = arith.constant 0 : index
    %c0_20 = arith.constant 0 : index
    %29 = vector.load %arg7[%c0_19, %c0_20] : memref<1x256xf32, #tpu.memory_space<vmem>>, vector<1x256xf32>
    %30 = vector.broadcast %29 : vector<1x256xf32> to vector<32x256xf32>
    %31 = arith.addf %28, %30 : vector<32x256xf32>
    %c0_21 = arith.constant 0 : index
    %c0_22 = arith.constant 0 : index
    %32 = vector.load %arg8[%c0_21, %c0_22] : memref<32x256xf32, #tpu.memory_space<vmem>>, vector<32x256xf32>
    tpu.vector_store %arg8[%c0_21, %c0_22], %31 {strides = array<i32>} : memref<32x256xf32, #tpu.memory_space<vmem>>, vector<32x256xf32>,
    return
  }
  func.func @transform_0(%arg0: i32) -> (i32, i32) {
    %c0_i32 = arith.constant 0 : i32
    %c0_i32_0 = arith.constant 0 : i32
    return %arg0, %c0_i32 : i32, i32
  }
  func.func @transform_1(%arg0: i32) -> (i32, i32) {
    %c0_i32 = arith.constant 0 : i32
    %c0_i32_0 = arith.constant 0 : i32
    %c0_i32_1 = arith.constant 0 : i32
    return %c0_i32, %c0_i32_0 : i32, i32
  }
  func.func @transform_2(%arg0: i32) -> (i32, i32) {
    %c0_i32 = arith.constant 0 : i32
    %c0_i32_0 = arith.constant 0 : i32
    %c0_i32_1 = arith.constant 0 : i32
    return %c0_i32, %c0_i32_0 : i32, i32
  }
  func.func @transform_3(%arg0: i32) -> (i32, i32) {
    %c0_i32 = arith.constant 0 : i32
    %c0_i32_0 = arith.constant 0 : i32
    %c0_i32_1 = arith.constant 0 : i32
    return %c0_i32, %c0_i32_0 : i32, i32
  }
  func.func @transform_4(%arg0: i32) -> (i32, i32) {
    %c0_i32 = arith.constant 0 : i32
    %c0_i32_0 = arith.constant 0 : i32
    %c0_i32_1 = arith.constant 0 : i32
    return %c0_i32, %c0_i32_0 : i32, i32
  }
  func.func @transform_5(%arg0: i32) -> (i32, i32) {
    %c0_i32 = arith.constant 0 : i32
    %c0_i32_0 = arith.constant 0 : i32
    %c0_i32_1 = arith.constant 0 : i32
    return %c0_i32, %c0_i32_0 : i32, i32
  }
  func.func @transform_6(%arg0: i32) -> (i32, i32) {
    %c0_i32 = arith.constant 0 : i32
    %c0_i32_0 = arith.constant 0 : i32
    %c0_i32_1 = arith.constant 0 : i32
    return %c0_i32, %c0_i32_0 : i32, i32
  }
  func.func @transform_7(%arg0: i32) -> (i32, i32) {
    %c0_i32 = arith.constant 0 : i32
    %c0_i32_0 = arith.constant 0 : i32
    return %arg0, %c0_i32 : i32, i32
  }
}

</mosaic_0001>

<llo_original>
// kernel: tpu_custom_call.1
$region0: #{tpu_custom_call.1}
  #allocation0 [shape = 'u32[]', space=smem, size = 0x4, offset = 0x4, fixed_abs, tag = 'smem constant byte address 0x4 - core index']
  #allocation1 [shape = 'u32[144,128]{1,0:T(1,128)}', space=vmem, size = 0x12000, scoped, tag = 'internal scratch']
  %s0 = inlined_call_operand.vmem [shape: f32[64,32], index: 0, kind: input, shape index: {}]
  %s1 = inlined_call_operand.vmem [shape: f32[32,64], index: 1, kind: input, shape index: {}]
  %s2 = inlined_call_operand.vmem [shape: f32[1,64], index: 2, kind: input, shape index: {}]
  %s3 = inlined_call_operand.vmem [shape: f32[64,128], index: 3, kind: input, shape index: {}]
  %s4 = inlined_call_operand.vmem [shape: f32[1,128], index: 4, kind: input, shape index: {}]
  %s5 = inlined_call_operand.hbm [shape: f32[128,256], index: 5, kind: input, shape index: {}]
  %s6 = inlined_call_operand.vmem [shape: f32[1,256], index: 6, kind: input, shape index: {}]
  %s7 = inlined_call_operand.hbm [shape: f32[64,256], index: 7, kind: output, shape index: {}]
  %s8 = sld [smem:[#allocation0]]
  $region65: #{tpu_custom_call.1} parent=0
    _
  %s10 = ssub.s32 1, %s8
  %s11 = scalar_select 0, %s10, %s8
  $region1: #{tpu_custom_call.1} parent=0
    #allocation2 [shape = 'u8[131072]{0}', space=vmem, size = 0x20000, scoped, tag = 'input window, operand 5, single buffered']
    #allocation3 [shape = 's32[2]{0}', space=sflag, size = 0x8, scoped, tag = 'scoped memory for tpu_custom_call.1']
    #allocation4 [shape = 's32[2]{0}', space=sflag, size = 0x8, scoped, tag = 'scoped memory for tpu_custom_call.1']
    #allocation5 [shape = 'u8[65536]{0}', space=vmem, size = 0x10000, scoped, tag = 'output window, operand 0']
    %12 = vsyncpa [#allocation3], 0
    %13 = vsyncpa [#allocation4], 0
    %s14 = scalar_lea.sflag [#allocation4], 1
    %15 = vsyncpa %s14, 0
    loop: start=0, step=1, limit=4
    $region2: #{tpu_custom_call.1} parent=1 // loop_pre_header
      _
    $region3: #{tpu_custom_call.1} parent=1 // loop_header
      %s17 = sphi 0, %s21
      %p18 = scmp.ge.s32.totalorder %s17, 4
      %s27 = sphi 0, %s29
      %s30 = sphi 0, %s27
      %s31 = sphi 0, %s30
      %s47 = sphi 0, %s31
      %s51 = sphi 0, %s51
      %s53 = sphi 0, %s51
      %s54 = sphi 0, %s53
      %s68 = sphi 0, %s54
      %s72 = sphi 0, %s72
      %s74 = sphi 0, %s72
      %s75 = sphi 0, %s74
      %s89 = sphi 0, %s75
      %s93 = sphi 0, %s93
      %s95 = sphi 0, %s93
      %s96 = sphi 0, %s95
      %s110 = sphi 0, %s96
      %s114 = sphi 0, %s114
      %s116 = sphi 0, %s114
      %s117 = sphi 0, %s116
      %s131 = sphi 0, %s117
      %s135 = sphi 0, %s135
      %s137 = sphi 0, %s135
      %s138 = sphi 0, %s137
      %s152 = sphi 0, %s138
      %s156 = sphi 0, %s156
      %s158 = sphi 0, %s156
      %s159 = sphi 0, %s158
      %s173 = sphi 0, %s159
      %s179 = sphi 0, %s181
      %s182 = sphi 0, %s179
      %s183 = sphi 0, %s182
      %s199 = sphi 0, %s183
    $region4: #{tpu_custom_call.1} parent=1 // loop_header_branch
      %20 = sbr.rel (%p18) target = $region8
    $region5: #{tpu_custom_call.1} parent=1 // loop_body
      %s22 = ssub.s32 %s17, 1
      %s23 = ssub.s32 %s17, 2
      %s24 = sadd.s32 %s17, 1
      %s25 = ssub.s32 %s17, %s24
      %p26 = scmp.eq.s32.totalorder %s25, 0
      %s28 = sadd.s32 %s27, 1
      %s29 = scalar_select %p26, %s27, %s28
      %p32 = pneg %p26
      %p33 = scmp.eq.s32.totalorder %s17, 1
      %p34 = por %p32, %p33
      %p35 = scmp.ne.s32.totalorder %s27, %s30
      %p36 = scmp.eq.s32.totalorder %s17, 0
      %p37 = por %p35, %p36
      %p38 = scmp.ne.s32.totalorder %s27, %s30
      %p39 = scmp.eq.s32.totalorder %s22, 1
      %p40 = por %p38, %p39
      %p41 = scmp.ne.s32.totalorder %s30, %s31
      %p42 = scmp.eq.s32.totalorder %s22, 0
      %p43 = por %p41, %p42
      %p44 = scmp.ne.s32.totalorder %s30, %s31
      %p45 = scmp.eq.s32.totalorder %s23, 1
      %p46 = por %p44, %p45
      %p48 = scmp.ne.s32.totalorder %s31, %s47
      %p49 = scmp.eq.s32.totalorder %s23, 0
      %p50 = por %p48, %p49
      %s52 = sadd.s32 %s51, 1
      %p55 = scmp.eq.s32.totalorder %s17, 1
      %p56 = scmp.ne.s32.totalorder %s51, %s53
      %p57 = scmp.eq.s32.totalorder %s17, 0
      %p58 = por %p56, %p57
      %p59 = scmp.ne.s32.totalorder %s51, %s53
      %p60 = scmp.eq.s32.totalorder %s22, 1
      %p61 = por %p59, %p60
      %p62 = scmp.ne.s32.totalorder %s53, %s54
      %p63 = scmp.eq.s32.totalorder %s22, 0
      %p64 = por %p62, %p63
      %p65 = scmp.ne.s32.totalorder %s53, %s54
      %p66 = scmp.eq.s32.totalorder %s23, 1
      %p67 = por %p65, %p66
      %p69 = scmp.ne.s32.totalorder %s54, %s68
      %p70 = scmp.eq.s32.totalorder %s23, 0
      %p71 = por %p69, %p70
      %s73 = sadd.s32 %s72, 1
      %p76 = scmp.eq.s32.totalorder %s17, 1
      %p77 = scmp.ne.s32.totalorder %s72, %s74
      %p78 = scmp.eq.s32.totalorder %s17, 0
      %p79 = por %p77, %p78
      %p80 = scmp.ne.s32.totalorder %s72, %s74
      %p81 = scmp.eq.s32.totalorder %s22, 1
      %p82 = por %p80, %p81
      %p83 = scmp.ne.s32.totalorder %s74, %s75
      %p84 = scmp.eq.s32.totalorder %s22, 0
      %p85 = por %p83, %p84
      %p86 = scmp.ne.s32.totalorder %s74, %s75
      %p87 = scmp.eq.s32.totalorder %s23, 1
      %p88 = por %p86, %p87
      %p90 = scmp.ne.s32.totalorder %s75, %s89
      %p91 = scmp.eq.s32.totalorder %s23, 0
      %p92 = por %p90, %p91
      %s94 = sadd.s32 %s93, 1
      %p97 = scmp.eq.s32.totalorder %s17, 1
      %p98 = scmp.ne.s32.totalorder %s93, %s95
      %p99 = scmp.eq.s32.totalorder %s17, 0
      %p100 = por %p98, %p99
      %p101 = scmp.ne.s32.totalorder %s93, %s95
      %p102 = scmp.eq.s32.totalorder %s22, 1
      %p103 = por %p101, %p102
      %p104 = scmp.ne.s32.totalorder %s95, %s96
      %p105 = scmp.eq.s32.totalorder %s22, 0
      %p106 = por %p104, %p105
      %p107 = scmp.ne.s32.totalorder %s95, %s96
      %p108 = scmp.eq.s32.totalorder %s23, 1
      %p109 = por %p107, %p108
      %p111 = scmp.ne.s32.totalorder %s96, %s110
      %p112 = scmp.eq.s32.totalorder %s23, 0
      %p113 = por %p111, %p112
      %s115 = sadd.s32 %s114, 1
      %p118 = scmp.eq.s32.totalorder %s17, 1
      %p119 = scmp.ne.s32.totalorder %s114, %s116
      %p120 = scmp.eq.s32.totalorder %s17, 0
      %p121 = por %p119, %p120
      %p122 = scmp.ne.s32.totalorder %s114, %s116
      %p123 = scmp.eq.s32.totalorder %s22, 1
      %p124 = por %p122, %p123
      %p125 = scmp.ne.s32.totalorder %s116, %s117
      %p126 = scmp.eq.s32.totalorder %s22, 0
      %p127 = por %p125, %p126
      %p128 = scmp.ne.s32.totalorder %s116, %s117
      %p129 = scmp.eq.s32.totalorder %s23, 1
      %p130 = por %p128, %p129
      %p132 = scmp.ne.s32.totalorder %s117, %s131
      %p133 = scmp.eq.s32.totalorder %s23, 0
      %p134 = por %p132, %p133
      %s136 = sadd.s32 %s135, 1
      %p139 = scmp.eq.s32.totalorder %s17, 1
      %p140 = scmp.ne.s32.totalorder %s135, %s137
      %p141 = scmp.eq.s32.totalorder %s17, 0
      %p142 = por %p140, %p141
      %p143 = scmp.ne.s32.totalorder %s135, %s137
      %p144 = scmp.eq.s32.totalorder %s22, 1
      %p145 = por %p143, %p144
      %p146 = scmp.ne.s32.totalorder %s137, %s138
      %p147 = scmp.eq.s32.totalorder %s22, 0
      %p148 = por %p146, %p147
      %p149 = scmp.ne.s32.totalorder %s137, %s138
      %p150 = scmp.eq.s32.totalorder %s23, 1
      %p151 = por %p149, %p150
      %p153 = scmp.ne.s32.totalorder %s138, %s152
      %p154 = scmp.eq.s32.totalorder %s23, 0
      %p155 = por %p153, %p154
      %s157 = sadd.s32 %s156, 1
      %p160 = scmp.eq.s32.totalorder %s17, 1
      %p161 = scmp.ne.s32.totalorder %s156, %s158
      %p162 = scmp.eq.s32.totalorder %s17, 0
      %p163 = por %p161, %p162
      %p164 = scmp.ne.s32.totalorder %s156, %s158
      %p165 = scmp.eq.s32.totalorder %s22, 1
      %p166 = por %p164, %p165
      %p167 = scmp.ne.s32.totalorder %s158, %s159
      %p168 = scmp.eq.s32.totalorder %s22, 0
      %p169 = por %p167, %p168
      %p170 = scmp.ne.s32.totalorder %s158, %s159
      %p171 = scmp.eq.s32.totalorder %s23, 1
      %p172 = por %p170, %p171
      %p174 = scmp.ne.s32.totalorder %s159, %s173
      %p175 = scmp.eq.s32.totalorder %s23, 0
      %p176 = por %p174, %p175
      %s177 = ssub.s32 %s17, %s24
      %p178 = scmp.eq.s32.totalorder %s177, 0
      %s180 = sadd.s32 %s179, 1
      %s181 = scalar_select %p178, %s179, %s180
      %p184 = pneg %p178
      %p185 = scmp.eq.s32.totalorder %s17, 1
      %p186 = por %p184, %p185
      %p187 = scmp.ne.s32.totalorder %s179, %s182
      %p188 = scmp.eq.s32.totalorder %s17, 0
      %p189 = por %p187, %p188
      %p190 = scmp.ne.s32.totalorder %s179, %s182
      %p191 = scmp.eq.s32.totalorder %s22, 1
      %p192 = por %p190, %p191
      %p193 = scmp.ne.s32.totalorder %s182, %s183
      %p194 = scmp.eq.s32.totalorder %s22, 0
      %p195 = por %p193, %p194
      %p196 = scmp.ne.s32.totalorder %s182, %s183
      %p197 = scmp.eq.s32.totalorder %s23, 1
      %p198 = por %p196, %p197
      %p200 = scmp.ne.s32.totalorder %s183, %s199
      %p201 = scmp.eq.s32.totalorder %s23, 0
      %p202 = por %p200, %p201
      %p203 = scmp.le.s32.totalorder 1, %s17
      %p204 = scmp.lt.s32.totalorder %s17, 3
      %p205 = pnand %p203, %p204
      %p206 = pneg %p205
      // Predicated region
      $region9: #{tpu_custom_call.1} parent=5 // pred_check
        _
      $region10: #{tpu_custom_call.1} parent=5 // pred_check_branch
        %208 = sbr.rel (%p205) target = $region12
      $region11: #{tpu_custom_call.1} parent=5 // pred_region
        %s209 = ssub.s32 %s17, 1
        // Predicated region
        $region13: #{tpu_custom_call.1} parent=11 // pred_check
          %p210 = pneg %p64
        $region14: #{tpu_custom_call.1} parent=11 // pred_check_branch
          %212 = sbr.rel (%p210) target = $region16
        $region15: #{tpu_custom_call.1} parent=11 // pred_region
          _
        $region16: #{tpu_custom_call.1} parent=11 // pred_fallthru
          _
        // Predicated region
        $region17: #{tpu_custom_call.1} parent=11 // pred_check
          %p213 = pneg %p85
        $region18: #{tpu_custom_call.1} parent=11 // pred_check_branch
          %215 = sbr.rel (%p213) target = $region20
        $region19: #{tpu_custom_call.1} parent=11 // pred_region
          _
        $region20: #{tpu_custom_call.1} parent=11 // pred_fallthru
          _
        // Predicated region
        $region21: #{tpu_custom_call.1} parent=11 // pred_check
          %p216 = pneg %p106
        $region22: #{tpu_custom_call.1} parent=11 // pred_check_branch
          %218 = sbr.rel (%p216) target = $region24
        $region23: #{tpu_custom_call.1} parent=11 // pred_region
          _
        $region24: #{tpu_custom_call.1} parent=11 // pred_fallthru
          _
        // Predicated region
        $region25: #{tpu_custom_call.1} parent=11 // pred_check
          %p219 = pneg %p127
        $region26: #{tpu_custom_call.1} parent=11 // pred_check_branch
          %221 = sbr.rel (%p219) target = $region28
        $region27: #{tpu_custom_call.1} parent=11 // pred_region
          _
        $region28: #{tpu_custom_call.1} parent=11 // pred_fallthru
          _
        // Predicated region
        $region29: #{tpu_custom_call.1} parent=11 // pred_check
          %p222 = pneg %p148
        $region30: #{tpu_custom_call.1} parent=11 // pred_check_branch
          %224 = sbr.rel (%p222) target = $region32
        $region31: #{tpu_custom_call.1} parent=11 // pred_region
          %s226 = ssub.s32 4096, 4096
          %227 = vsyncadd [#allocation3], %s226
          %s228 = sshll.u32 [#allocation2], 4
          %s229 = int_to_ptr.vmem [resolvable:$true] %s228
          %234 = dma.hbm_to_vmem [thread:$0]  %s5, 4096, %s229, [#allocation3], 256, 256, 16
        $region32: #{tpu_custom_call.1} parent=11 // pred_fallthru
          _
        // Predicated region
        $region33: #{tpu_custom_call.1} parent=11 // pred_check
          %p235 = pneg %p169
        $region34: #{tpu_custom_call.1} parent=11 // pred_check_branch
          %237 = sbr.rel (%p235) target = $region36
        $region35: #{tpu_custom_call.1} parent=11 // pred_region
          _
        $region36: #{tpu_custom_call.1} parent=11 // pred_fallthru
          _
      $region12: #{tpu_custom_call.1} parent=5 // pred_fallthru
        _
      %p238 = scmp.lt.s32.totalorder %s17, 2
      // Predicated region
      $region37: #{tpu_custom_call.1} parent=5 // pred_check
        %p239 = pneg %p238
      $region38: #{tpu_custom_call.1} parent=5 // pred_check_branch
        %241 = sbr.rel (%p239) target = $region40
      $region39: #{tpu_custom_call.1} parent=5 // pred_region
        // Predicated region
        $region41: #{tpu_custom_call.1} parent=39 // pred_check
          %p242 = pneg %p37
        $region42: #{tpu_custom_call.1} parent=39 // pred_check_branch
          %244 = sbr.rel (%p242) target = $region44
        $region43: #{tpu_custom_call.1} parent=39 // pred_region
          %s245 = smul.u32 4, %s17
          %p246 = scmp.lt.s32.totalorder %s245, 7
          %s247 = scalar_select %p246, %s245, 7
          %s248 = smul.addr %s247, 8
          %s249 = scalar_lea.vmem %s0, %s248
          %s250 = smul.u32 4, %s17
        $region44: #{tpu_custom_call.1} parent=39 // pred_fallthru
          _
      $region40: #{tpu_custom_call.1} parent=5 // pred_fallthru
        _
      %p251 = scmp.le.s32.totalorder 1, %s17
      %p252 = scmp.lt.s32.totalorder %s17, 3
      %p253 = pnand %p251, %p252
      %p254 = pneg %p253
      // Predicated region
      $region45: #{tpu_custom_call.1} parent=5 // pred_check
        _
      $region46: #{tpu_custom_call.1} parent=5 // pred_check_branch
        %256 = sbr.rel (%p253) target = $region48
      $region47: #{tpu_custom_call.1} parent=5 // pred_region
        %s257 = ssub.s32 %s17, 1
        // Predicated region
        $region49: #{tpu_custom_call.1} parent=47 // pred_check
          %p258 = pneg %p148
        $region50: #{tpu_custom_call.1} parent=47 // pred_check_branch
          %260 = sbr.rel (%p258) target = $region52
        $region51: #{tpu_custom_call.1} parent=47 // pred_region
          %261 = dma.done [#allocation3], 4096
        $region52: #{tpu_custom_call.1} parent=47 // pred_fallthru
          _
        %s262 = smul.u32 4, %s22
        %p263 = scmp.lt.s32.totalorder %s262, 7
        %s264 = scalar_select %p263, %s262, 7
        %s265 = smul.addr %s264, 8
        %s266 = scalar_lea.vmem %s0, %s265
        %p267 = pneg %p43
        %p268 = pneg %p40
        %p269 = pneg %p64
        %p270 = pneg %p61
        %p271 = pneg %p85
        %p272 = pneg %p82
        %p273 = pneg %p106
        %p274 = pneg %p103
        %p275 = pneg %p127
        %p276 = pneg %p124
        %p277 = pneg %p148
        %p278 = pneg %p145
        %p279 = pneg %p169
        %p280 = pneg %p166
        %p281 = pneg %p195
        %p282 = pneg %p192
        %s283 = sand.u32 %s182, 1
        %s284 = scalar_lea.sflag [#allocation4], %s283
        %s285 = sand.u32 %s182, 1
        %s286 = smul.addr %s285, 64
        %s287 = scalar_lea.vmem [#allocation5], %s286
        %s288 = smul.u32 4, %s22
        %p289 = scmp.lt.s32.totalorder %s288, 7
        %s290 = scalar_select %p289, %s288, 7
        %s291 = smul.addr %s290, 8
        %s292 = scalar_lea.vmem %s0, %s291
        %s293 = smul.u32 4, %s22
        %s294 = smul.u32 4, %s22
        %v295 = vld [vmem:[%s292] sm:$0xff]
        %v296 = vld [vmem:[%s292 + $0x8] sm:$0xff]
        %v297 = vld [vmem:[%s292 + $0x10] sm:$0xff]
        %v298 = vld [vmem:[%s292 + $0x18] sm:$0xff]
        %v299 = vld [vmem:[%s1] sm:$0xff]
        %v300 = vld [vmem:[%s1 + $0x8] sm:$0xff]
        %v301 = vld [vmem:[%s1 + $0x10] sm:$0xff]
        %v302 = vld [vmem:[%s1 + $0x18] sm:$0xff]
        %v303 = vld [vmem:[%s2] sm:$0x1]
        %v305 = vlaneseq
        %v306 = vshrl.u32 %v305, 7
        %v307 = vsub.s32 0, %v306
        %v308 = vrot.slane %v303, %v307
        %vm310 = vcmask 261120
        %v312 = vsel %vm310, %v295, 0
        %v315 = vsel %vm310, %v296, 0
        %v318 = vsel %vm310, %v297, 0
        %v321 = vsel %vm310, %v298, 0
        %323 = vmatprep.subr.mxu0 0.0
        %324 = vmatpush1.msra.mxu0 %v299
        %325 = vmatprep.subr.mxu0 0.0
        %326 = vmatpush1.msra.mxu0 %v300
        %327 = vmatprep.subr.mxu0 0.0
        %328 = vmatpush1.msra.mxu0 %v301
        %329 = vmatprep.subr.mxu0 0.0
        %330 = vmatpush1.msra.mxu0 %v302
        %331 = vmatprep.subr.mxu0 0.0
        %332 = vmatpush1.msra.mxu0 0.0
        %333 = vmatprep.subr.mxu0 0.0
        %334 = vmatpush1.msra.mxu0 0.0
        %335 = vmatprep.subr.mxu0 0.0
        %336 = vmatpush1.msra.mxu0 0.0
        %337 = vmatprep.subr.mxu0 0.0
        %338 = vmatpush1.msra.mxu0 0.0
        %339 = vmatprep.subr.mxu0 0.0
        %340 = vmatpush1.msra.mxu0 0.0
        %341 = vmatprep.subr.mxu0 0.0
        %342 = vmatpush1.msra.mxu0 0.0
        %343 = vmatprep.subr.mxu0 0.0
        %344 = vmatpush1.msra.mxu0 0.0
        %345 = vmatprep.subr.mxu0 0.0
        %346 = vmatpush1.msra.mxu0 0.0
        %347 = vmatprep.subr.mxu0 0.0
        %348 = vmatpush1.msra.mxu0 0.0
        %349 = vmatprep.subr.mxu0 0.0
        %350 = vmatpush1.msra.mxu0 0.0
        %351 = vmatprep.subr.mxu0 0.0
        %352 = vmatpush1.msra.mxu0 0.0
        %353 = vmatprep.subr.mxu0 0.0
        %354 = vmatpush1.msra.mxu0 0.0
        %355 = vmatprep.subr.mxu0 0.0
        %356 = vmatpush1.msra.mxu0 0.0
        %357 = vmatprep.subr.mxu0 0.0
        %358 = vmatpush1.msra.mxu0 0.0
        %359 = vmatprep.subr.mxu0 0.0
        %360 = vmatpush1.msra.mxu0 0.0
        %361 = vmatprep.subr.mxu0 0.0
        %362 = vmatpush1.msra.mxu0 0.0
        %363 = vmatprep.subr.mxu0 0.0
        %364 = vmatpush1.msra.mxu0 0.0
        %365 = vmatprep.subr.mxu0 0.0
        %366 = vmatpush1.msra.mxu0 0.0
        %367 = vmatprep.subr.mxu0 0.0
        %368 = vmatpush1.msra.mxu0 0.0
        %369 = vmatprep.subr.mxu0 0.0
        %370 = vmatpush1.msra.mxu0 0.0
        %371 = vmatprep.subr.mxu0 0.0
        %372 = vmatpush1.msra.mxu0 0.0
        %373 = vmatprep.subr.mxu0 0.0
        %374 = vmatpush1.msra.mxu0 0.0
        %375 = vmatprep.subr.mxu0 0.0
        %376 = vmatpush1.msra.mxu0 0.0
        %377 = vmatprep.subr.mxu0 0.0
        %378 = vmatpush1.msra.mxu0 0.0
        %379 = vmatprep.subr.mxu0 0.0
        %380 = vmatpush1.msra.mxu0 0.0
        %381 = vmatprep.subr.mxu0 0.0
        %382 = vmatpush1.msra.mxu0 0.0
        %383 = vmatprep.subr.mxu0 0.0
        %384 = vmatpush1.msra.mxu0 0.0
        %385 = vmatprep.subr.mxu0 0.0
        %386 = vmatpush1.msra.mxu0 0.0
        %387 = vmatprep.mubr.f32.mxu0 0.0
        %388 = vmatmul.mubr.f32.gmra.mrb[0].mxu0 %v312
        %v389 = vpop.f32.mrb[0].mxu0
        %v390 = vadd.f32 %v308, %v389
        %v391 = vpop.f32.mrb[0].mxu0
        %392 = vmatprep.mubr.f32.mxu0 0.0
        %393 = vmatmul.mubr.f32.gmra.mrb[0].mxu0 %v315
        %v394 = vpop.f32.mrb[0].mxu0
        %v395 = vadd.f32 %v308, %v394
        %v396 = vpop.f32.mrb[0].mxu0
        %397 = vmatprep.mubr.f32.mxu0 0.0
        %398 = vmatmul.mubr.f32.gmra.mrb[0].mxu0 %v318
        %v399 = vpop.f32.mrb[0].mxu0
        %v400 = vadd.f32 %v308, %v399
        %v401 = vpop.f32.mrb[0].mxu0
        %402 = vmatprep.mubr.f32.mxu0 0.0
        %403 = vmatmul.mubr.f32.gmra.mrb[0].mxu0 %v321
        %v404 = vpop.f32.mrb[0].mxu0
        %v405 = vadd.f32 %v308, %v404
        %v406 = vpop.f32.mrb[0].mxu0
        %407 = vdwg.mxu0
        %v408 = vmul.f32 %v390, 0.5
        %v409 = vmul.f32 %v395, 0.5
        %v410 = vmul.f32 %v400, 0.5
        %v411 = vmul.f32 %v405, 0.5
        %v412 = vmul.f32 %v390, 0.70710677
        %v413 = vmul.f32 %v395, 0.70710677
        %v414 = vmul.f32 %v400, 0.70710677
        %v415 = vmul.f32 %v405, 0.70710677
        %v416 = verf.f32.pop %v412
        %v417 = verf.f32.pop %v413
        %v418 = verf.f32.pop %v414
        %v419 = verf.f32.pop %v415
        %v420 = vadd.f32 %v416, 1.0
        %v421 = vadd.f32 %v417, 1.0
        %v422 = vadd.f32 %v418, 1.0
        %v423 = vadd.f32 %v419, 1.0
        %v424 = vmul.f32 %v408, %v420
        %v425 = vmul.f32 %v409, %v421
        %v426 = vmul.f32 %v410, %v422
        %v427 = vmul.f32 %v411, %v423
        %v428 = vld [vmem:[%s3] sm:$0xff]
        %v429 = vld [vmem:[%s3 + $0x8] sm:$0xff]
        %v430 = vld [vmem:[%s3 + $0x10] sm:$0xff]
        %v431 = vld [vmem:[%s3 + $0x18] sm:$0xff]
        %v432 = vld [vmem:[%s3 + $0x20] sm:$0xff]
        %v433 = vld [vmem:[%s3 + $0x28] sm:$0xff]
        %v434 = vld [vmem:[%s3 + $0x30] sm:$0xff]
        %v435 = vld [vmem:[%s3 + $0x38] sm:$0xff]
        %v436 = vld [vmem:[%s4] sm:$0x1]
        %v438 = vlaneseq
        %v439 = vshrl.u32 %v438, 7
        %v440 = vsub.s32 0, %v439
        %v441 = vrot.slane %v436, %v440
        %vm443 = vcmask 523264
        %v445 = vsel %vm443, %v424, 0
        %v448 = vsel %vm443, %v425, 0
        %v451 = vsel %vm443, %v426, 0
        %v454 = vsel %vm443, %v427, 0
        %456 = vmatprep.subr.mxu0 0.0
        %457 = vmatpush1.msra.mxu0 %v428
        %458 = vmatprep.subr.mxu0 0.0
        %459 = vmatpush1.msra.mxu0 %v429
        %460 = vmatprep.subr.mxu0 0.0
        %461 = vmatpush1.msra.mxu0 %v430
        %462 = vmatprep.subr.mxu0 0.0
        %463 = vmatpush1.msra.mxu0 %v431
        %464 = vmatprep.subr.mxu0 0.0
        %465 = vmatpush1.msra.mxu0 %v432
        %466 = vmatprep.subr.mxu0 0.0
        %467 = vmatpush1.msra.mxu0 %v433
        %468 = vmatprep.subr.mxu0 0.0
        %469 = vmatpush1.msra.mxu0 %v434
        %470 = vmatprep.subr.mxu0 0.0
        %471 = vmatpush1.msra.mxu0 %v435
        %472 = vmatprep.subr.mxu0 0.0
        %473 = vmatpush1.msra.mxu0 0.0
        %474 = vmatprep.subr.mxu0 0.0
        %475 = vmatpush1.msra.mxu0 0.0
        %476 = vmatprep.subr.mxu0 0.0
        %477 = vmatpush1.msra.mxu0 0.0
        %478 = vmatprep.subr.mxu0 0.0
        %479 = vmatpush1.msra.mxu0 0.0
        %480 = vmatprep.subr.mxu0 0.0
        %481 = vmatpush1.msra.mxu0 0.0
        %482 = vmatprep.subr.mxu0 0.0
        %483 = vmatpush1.msra.mxu0 0.0
        %484 = vmatprep.subr.mxu0 0.0
        %485 = vmatpush1.msra.mxu0 0.0
        %486 = vmatprep.subr.mxu0 0.0
        %487 = vmatpush1.msra.mxu0 0.0
        %488 = vmatprep.subr.mxu0 0.0
        %489 = vmatpush1.msra.mxu0 0.0
        %490 = vmatprep.subr.mxu0 0.0
        %491 = vmatpush1.msra.mxu0 0.0
        %492 = vmatprep.subr.mxu0 0.0
        %493 = vmatpush1.msra.mxu0 0.0
        %494 = vmatprep.subr.mxu0 0.0
        %495 = vmatpush1.msra.mxu0 0.0
        %496 = vmatprep.subr.mxu0 0.0
        %497 = vmatpush1.msra.mxu0 0.0
        %498 = vmatprep.subr.mxu0 0.0
        %499 = vmatpush1.msra.mxu0 0.0
        %500 = vmatprep.subr.mxu0 0.0
        %501 = vmatpush1.msra.mxu0 0.0
        %502 = vmatprep.subr.mxu0 0.0
        %503 = vmatpush1.msra.mxu0 0.0
        %504 = vmatprep.subr.mxu0 0.0
        %505 = vmatpush1.msra.mxu0 0.0
        %506 = vmatprep.subr.mxu0 0.0
        %507 = vmatpush1.msra.mxu0 0.0
        %508 = vmatprep.subr.mxu0 0.0
        %509 = vmatpush1.msra.mxu0 0.0
        %510 = vmatprep.subr.mxu0 0.0
        %511 = vmatpush1.msra.mxu0 0.0
        %512 = vmatprep.subr.mxu0 0.0
        %513 = vmatpush1.msra.mxu0 0.0
        %514 = vmatprep.subr.mxu0 0.0
        %515 = vmatpush1.msra.mxu0 0.0
        %516 = vmatprep.subr.mxu0 0.0
        %517 = vmatpush1.msra.mxu0 0.0
        %518 = vmatprep.subr.mxu0 0.0
        %519 = vmatpush1.msra.mxu0 0.0
        %520 = vmatprep.mubr.f32.mxu0 0.0
        %521 = vmatmul.mubr.f32.gmra.mrb[0].mxu0 %v445
        %v522 = vpop.f32.mrb[0].mxu0
        %v523 = vadd.f32 %v441, %v522
        %v524 = vpop.f32.mrb[0].mxu0
        %525 = vmatprep.mubr.f32.mxu0 0.0
        %526 = vmatmul.mubr.f32.gmra.mrb[0].mxu0 %v448
        %v527 = vpop.f32.mrb[0].mxu0
        %v528 = vadd.f32 %v441, %v527
        %v529 = vpop.f32.mrb[0].mxu0
        %530 = vmatprep.mubr.f32.mxu0 0.0
        %531 = vmatmul.mubr.f32.gmra.mrb[0].mxu0 %v451
        %v532 = vpop.f32.mrb[0].mxu0
        %v533 = vadd.f32 %v441, %v532
        %v534 = vpop.f32.mrb[0].mxu0
        %535 = vmatprep.mubr.f32.mxu0 0.0
        %536 = vmatmul.mubr.f32.gmra.mrb[0].mxu0 %v454
        %v537 = vpop.f32.mrb[0].mxu0
        %v538 = vadd.f32 %v441, %v537
        %v539 = vpop.f32.mrb[0].mxu0
        %540 = vdwg.mxu0
        %v541 = vmul.f32 %v523, 0.5
        %v542 = vmul.f32 %v528, 0.5
        %v543 = vmul.f32 %v533, 0.5
        %v544 = vmul.f32 %v538, 0.5
        %v545 = vmul.f32 %v523, 0.70710677
        %v546 = vmul.f32 %v528, 0.70710677
        %v547 = vmul.f32 %v533, 0.70710677
        %v548 = vmul.f32 %v538, 0.70710677
        %v549 = verf.f32.pop %v545
        %v550 = verf.f32.pop %v546
        %v551 = verf.f32.pop %v547
        %v552 = verf.f32.pop %v548
        %v553 = vadd.f32 %v549, 1.0
        %v554 = vadd.f32 %v550, 1.0
        %v555 = vadd.f32 %v551, 1.0
        %v556 = vadd.f32 %v552, 1.0
        %v557 = vmul.f32 %v541, %v553
        %v558 = vmul.f32 %v542, %v554
        %v559 = vmul.f32 %v543, %v555
        %v560 = vmul.f32 %v544, %v556
        %v561 = vld [vmem:[#allocation2] sm:$0xff]
        %v562 = vld [vmem:[#allocation2 + $0x8] sm:$0xff]
        %v563 = vld [vmem:[#allocation2 + $0x10] sm:$0xff]
        %v564 = vld [vmem:[#allocation2 + $0x18] sm:$0xff]
        %v565 = vld [vmem:[#allocation2 + $0x20] sm:$0xff]
        %v566 = vld [vmem:[#allocation2 + $0x28] sm:$0xff]
        %v567 = vld [vmem:[#allocation2 + $0x30] sm:$0xff]
        %v568 = vld [vmem:[#allocation2 + $0x38] sm:$0xff]
        %v569 = vld [vmem:[#allocation2 + $0x40] sm:$0xff]
        %v570 = vld [vmem:[#allocation2 + $0x48] sm:$0xff]
        %v571 = vld [vmem:[#allocation2 + $0x50] sm:$0xff]
        %v572 = vld [vmem:[#allocation2 + $0x58] sm:$0xff]
        %v573 = vld [vmem:[#allocation2 + $0x60] sm:$0xff]
        %v574 = vld [vmem:[#allocation2 + $0x68] sm:$0xff]
        %v575 = vld [vmem:[#allocation2 + $0x70] sm:$0xff]
        %v576 = vld [vmem:[#allocation2 + $0x78] sm:$0xff]
        %v577 = vld [vmem:[#allocation2 + $0x80] sm:$0xff]
        %v578 = vld [vmem:[#allocation2 + $0x88] sm:$0xff]
        %v579 = vld [vmem:[#allocation2 + $0x90] sm:$0xff]
        %v580 = vld [vmem:[#allocation2 + $0x98] sm:$0xff]
        %v581 = vld [vmem:[#allocation2 + $0xa0] sm:$0xff]
        %v582 = vld [vmem:[#allocation2 + $0xa8] sm:$0xff]
        %v583 = vld [vmem:[#allocation2 + $0xb0] sm:$0xff]
        %v584 = vld [vmem:[#allocation2 + $0xb8] sm:$0xff]
        %v585 = vld [vmem:[#allocation2 + $0xc0] sm:$0xff]
        %v586 = vld [vmem:[#allocation2 + $0xc8] sm:$0xff]
        %v587 = vld [vmem:[#allocation2 + $0xd0] sm:$0xff]
        %v588 = vld [vmem:[#allocation2 + $0xd8] sm:$0xff]
        %v589 = vld [vmem:[#allocation2 + $0xe0] sm:$0xff]
        %v590 = vld [vmem:[#allocation2 + $0xe8] sm:$0xff]
        %v591 = vld [vmem:[#allocation2 + $0xf0] sm:$0xff]
        %v592 = vld [vmem:[#allocation2 + $0xf8] sm:$0xff]
        %v593 = vld [vmem:[%s6] sm:$0x3]
        %v595 = vlaneseq
        %v596 = vshrl.u32 %v595, 7
        %v597 = vsub.s32 0, %v596
        %v598 = vrot.slane %v593, %v597
        %v599 = vlaneseq
        %v600 = vshrl.u32 %v599, 7
        %v601 = vsub.s32 1, %v600
        %v602 = vrot.slane %v593, %v601
        %605 = vmatprep.subr.mxu0 %v562
        %606 = vmatpush1.msra.mxu0 %v561
        %607 = vmatprep.subr.mxu0 %v564
        %608 = vmatpush1.msra.mxu0 %v563
        %609 = vmatprep.subr.mxu0 %v566
        %610 = vmatpush1.msra.mxu0 %v565
        %611 = vmatprep.subr.mxu0 %v568
        %612 = vmatpush1.msra.mxu0 %v567
        %613 = vmatprep.subr.mxu0 %v570
        %614 = vmatpush1.msra.mxu0 %v569
        %615 = vmatprep.subr.mxu0 %v572
        %616 = vmatpush1.msra.mxu0 %v571
        %617 = vmatprep.subr.mxu0 %v574
        %618 = vmatpush1.msra.mxu0 %v573
        %619 = vmatprep.subr.mxu0 %v576
        %620 = vmatpush1.msra.mxu0 %v575
        %621 = vmatprep.subr.mxu0 %v578
        %622 = vmatpush1.msra.mxu0 %v577
        %623 = vmatprep.subr.mxu0 %v580
        %624 = vmatpush1.msra.mxu0 %v579
        %625 = vmatprep.subr.mxu0 %v582
        %626 = vmatpush1.msra.mxu0 %v581
        %627 = vmatprep.subr.mxu0 %v584
        %628 = vmatpush1.msra.mxu0 %v583
        %629 = vmatprep.subr.mxu0 %v586
        %630 = vmatpush1.msra.mxu0 %v585
        %631 = vmatprep.subr.mxu0 %v588
        %632 = vmatpush1.msra.mxu0 %v587
        %633 = vmatprep.subr.mxu0 %v590
        %634 = vmatpush1.msra.mxu0 %v589
        %635 = vmatprep.subr.mxu0 %v592
        %636 = vmatpush1.msra.mxu0 %v591
        %637 = vmatprep.subr.mxu0 0.0
        %638 = vmatpush1.msra.mxu0 0.0
        %639 = vmatprep.subr.mxu0 0.0
        %640 = vmatpush1.msra.mxu0 0.0
        %641 = vmatprep.subr.mxu0 0.0
        %642 = vmatpush1.msra.mxu0 0.0
        %643 = vmatprep.subr.mxu0 0.0
        %644 = vmatpush1.msra.mxu0 0.0
        %645 = vmatprep.subr.mxu0 0.0
        %646 = vmatpush1.msra.mxu0 0.0
        %647 = vmatprep.subr.mxu0 0.0
        %648 = vmatpush1.msra.mxu0 0.0
        %649 = vmatprep.subr.mxu0 0.0
        %650 = vmatpush1.msra.mxu0 0.0
        %651 = vmatprep.subr.mxu0 0.0
        %652 = vmatpush1.msra.mxu0 0.0
        %653 = vmatprep.subr.mxu0 0.0
        %654 = vmatpush1.msra.mxu0 0.0
        %655 = vmatprep.subr.mxu0 0.0
        %656 = vmatpush1.msra.mxu0 0.0
        %657 = vmatprep.subr.mxu0 0.0
        %658 = vmatpush1.msra.mxu0 0.0
        %659 = vmatprep.subr.mxu0 0.0
        %660 = vmatpush1.msra.mxu0 0.0
        %661 = vmatprep.subr.mxu0 0.0
        %662 = vmatpush1.msra.mxu0 0.0
        %663 = vmatprep.subr.mxu0 0.0
        %664 = vmatpush1.msra.mxu0 0.0
        %665 = vmatprep.subr.mxu0 0.0
        %666 = vmatpush1.msra.mxu0 0.0
        %667 = vmatprep.subr.mxu0 0.0
        %668 = vmatpush1.msra.mxu0 0.0
        %669 = vmatprep.mubr.f32.mxu0 0.0
        %670 = vmatmul.mubr.f32.gmra.mrb[0].mxu0 %v557
        %v671 = vpop.f32.mrb[0].mxu0
        %v672 = vadd.f32 %v598, %v671
        %v673 = vpop.f32.mrb[0].mxu0
        %v674 = vadd.f32 %v602, %v673
        %675 = vmatprep.mubr.f32.mxu0 0.0
        %676 = vmatmul.mubr.f32.gmra.mrb[0].mxu0 %v558
        %v677 = vpop.f32.mrb[0].mxu0
        %v678 = vadd.f32 %v598, %v677
        %v679 = vpop.f32.mrb[0].mxu0
        %v680 = vadd.f32 %v602, %v679
        %681 = vmatprep.mubr.f32.mxu0 0.0
        %682 = vmatmul.mubr.f32.gmra.mrb[0].mxu0 %v559
        %v683 = vpop.f32.mrb[0].mxu0
        %v684 = vadd.f32 %v598, %v683
        %v685 = vpop.f32.mrb[0].mxu0
        %v686 = vadd.f32 %v602, %v685
        %687 = vmatprep.mubr.f32.mxu0 0.0
        %688 = vmatmul.mubr.f32.gmra.mrb[0].mxu0 %v560
        %v689 = vpop.f32.mrb[0].mxu0
        %v690 = vadd.f32 %v598, %v689
        %v691 = vpop.f32.mrb[0].mxu0
        %v692 = vadd.f32 %v602, %v691
        %693 = vdwg.mxu0
        %694 = vst [vmem:[%s287] sm:$0xff] %v672
        %695 = vst [vmem:[%s287 + $0x8] sm:$0xff] %v674
        %696 = vst [vmem:[%s287 + $0x10] sm:$0xff] %v678
        %697 = vst [vmem:[%s287 + $0x18] sm:$0xff] %v680
        %698 = vst [vmem:[%s287 + $0x20] sm:$0xff] %v684
        %699 = vst [vmem:[%s287 + $0x28] sm:$0xff] %v686
        %700 = vst [vmem:[%s287 + $0x30] sm:$0xff] %v690
        %701 = vst [vmem:[%s287 + $0x38] sm:$0xff] %v692
        %s702 = sand.u32 %s182, 1
        %s703 = scalar_lea.sflag [#allocation4], %s702
        %s704 = sand.u32 %s182, 1
        %s705 = smul.addr %s704, 64
        %s706 = scalar_lea.vmem [#allocation5], %s705
        // Predicated region
        $region53: #{tpu_custom_call.1} parent=47 // pred_check
          %p707 = pneg %p192
        $region54: #{tpu_custom_call.1} parent=47 // pred_check_branch
          %709 = sbr.rel (%p707) target = $region56
        $region55: #{tpu_custom_call.1} parent=47 // pred_region
          %s710 = smul.u32 4, %s22
          %s712 = ssub.s32 1024, 1024
          %713 = vsyncadd %s703, %s712
          %s714 = smul.addr %s710, 2
          %s715 = smul.addr %s714, 128
          %s716 = scalar_lea.hbm %s7, %s715
          %s717 = sshll.u32 %s706, 4
          %s718 = int_to_ptr.vmem [resolvable:$true] %s717
          %723 = dma.vmem_to_hbm [thread:$0]  %s718, 1024, %s716, %s703, 256, 256, 16
        $region56: #{tpu_custom_call.1} parent=47 // pred_fallthru
          _
      $region48: #{tpu_custom_call.1} parent=5 // pred_fallthru
        _
      %p724 = scmp.le.s32.totalorder 2, %s17
      // Predicated region
      $region57: #{tpu_custom_call.1} parent=5 // pred_check
        %p725 = pneg %p724
      $region58: #{tpu_custom_call.1} parent=5 // pred_check_branch
        %727 = sbr.rel (%p725) target = $region60
      $region59: #{tpu_custom_call.1} parent=5 // pred_region
        %s728 = ssub.s32 %s17, 2
        // Predicated region
        $region61: #{tpu_custom_call.1} parent=59 // pred_check
          %p729 = pneg %p198
        $region62: #{tpu_custom_call.1} parent=59 // pred_check_branch
          %731 = sbr.rel (%p729) target = $region64
        $region63: #{tpu_custom_call.1} parent=59 // pred_region
          %s732 = sand.u32 %s183, 1
          %s733 = scalar_lea.sflag [#allocation4], %s732
          %s734 = sand.u32 %s183, 1
          %s735 = smul.addr %s734, 64
          %s736 = scalar_lea.vmem [#allocation5], %s735
          %737 = dma.done %s733, 1024
        $region64: #{tpu_custom_call.1} parent=59 // pred_fallthru
          _
      $region60: #{tpu_custom_call.1} parent=5 // pred_fallthru
        _
    $region6: #{tpu_custom_call.1} parent=1 // loop_footer
      %s21 = sadd.s32 1, %s17
    $region7: #{tpu_custom_call.1} parent=1 // loop_footer_branch
      %16 = sbr.rel target = $region3
    $region8: #{tpu_custom_call.1} parent=1 // loop_exit
      _
    %738 = vsyncpa [#allocation3], 1
    %s739 = scalar_lea.sflag [#allocation3], 1
    %740 = vsyncpa %s739, 1
    %741 = vsyncpa [#allocation4], 1
    %s742 = scalar_lea.sflag [#allocation4], 1
    %743 = vsyncpa %s742, 1

</llo_original>
